<compile_context>
chip_gen: v5e
topology: v5e:2x2
jax: 0.10.0
libtpu: 0.0.40
codegen_flags: <defaults>
</compile_context>

<pallas_src>
from functools import partial

import jax
import jax.numpy as jnp
from jax import lax
from jax.experimental import pallas as pl
from jax.experimental.pallas import tpu as pltpu


def _fused_conv_kernel(x_ref, planes_ref, a_ref, out_ref, xp_ref, *,
                       H, W, HO, WO, HP, WP, XR0, XC0, K):
    # x_ref     : (1, 1, H, W)   raw input plane                     (VMEM)
    # planes_ref: (2, HO, WO)    [0]=interior mask, [1]=affine plane (VMEM)
    # a_ref     : (K*K,)         folded input-plane taps             (SMEM)
    # out_ref   : (1, 1, HO, WO) relu(conv3) output                  (VMEM)
    # xp_ref    : (HP, WP)       scratch: zero-framed input plane

    # Build the zero-framed input plane once, then keep it in vregs.
    xp_ref[...] = jnp.zeros((HP, WP), jnp.float32)
    xp_ref[XR0:XR0 + H, XC0:XC0 + W] = x_ref[0, 0].astype(jnp.float32)
    xp = xp_ref[...]                                   # single VMEM read

    # 25 unrolled scalar FMAs over the (HO, WO) plane — pure VPU work on
    # value slices of the in-vreg plane (taps read as scalars from SMEM).
    acc = a_ref[0] * xp[0:HO, 0:WO]
    for dh in range(K):
        for dw in range(K):
            if dh == 0 and dw == 0:
                continue
            acc = acc + a_ref[dh * K + dw] * xp[dh:dh + HO, dw:dw + WO]

    inner_mask = planes_ref[0]
    affine = planes_ref[1]
    out_ref[0, 0] = jnp.maximum(acc * inner_mask + affine,
                                0.0).astype(out_ref.dtype)


def _model_forward(x, params):
    """x: (1, 1, H, W) float32 (NCHW, same convention as the PyTorch module)."""
    w1, b1, w2, b2, w3, b3 = params
    n, cin, h, w = x.shape
    assert n == 1 and cin == 1
    k = w2.shape[-1]                       # 5
    assert k == 5 and w2.shape[0] == w3.shape[1] and w2.shape[1] == w1.shape[0]

    f32 = jnp.float32
    p1, p2, p3, fpad = 1, 2, 1, 2          # conv pads and the F.pad width
    wpad_in = w + 2 * fpad                 # width after F.pad(x, (2,2,0,0))
    h1, w1o = h + 2 * p1, wpad_in + 2 * p1     # conv1 / conv2 output spatial
    ho, wo = h1 + 2 * p3, w1o + 2 * p3         # conv3 output spatial
    hp, wp = ho + k - 1, wo + k - 1            # fused-5x5 padded plane
    xr0, xc0 = p1 + p2 + p3, p1 + p2 + p3 + fpad   # 4, 6
    mr0 = mc0 = p2 + p3                            # 3

    # ---------- weight-only fold (tiny, fused into the same jit) ----------
    w1v = w1.reshape(-1).astype(f32)               # (Cmid,)
    w3v = w3.reshape(-1).astype(f32)               # (Cmid,)
    w2f = w2.astype(f32)                           # (Cmid, Cmid, k, k)
    w1b1 = jnp.stack([w1v, b1.astype(f32)], axis=-1)          # (Cmid, 2)
    ac = jnp.einsum('o,oihw,ij->jhw', w3v, w2f, w1b1)         # (2, k, k)
    a = ac[0].reshape(k * k)                                   # x-plane taps
    c = ac[1]                                                  # b1-mask taps
    d = jnp.dot(w3v, b2.astype(f32)) + b3.astype(f32)[0]       # scalar

    # Input-independent affine plane: correlation of the conv1-output-region
    # mask with the c taps, plus d in the interior; conv3's own pad=1 ring
    # is exactly b3.  Interior mask zeroes the x contribution on that ring.
    mp = jnp.zeros((hp, wp), f32).at[mr0:mr0 + h1, mc0:mc0 + w1o].set(1.0)
    cm = lax.conv_general_dilated(
        mp[None, None], c[None, None], (1, 1), 'VALID',
        dimension_numbers=("NCHW", "OIHW", "NCHW"),
        precision=lax.Precision.HIGHEST)[0, 0]                 # (ho, wo)
    rows = jnp.arange(ho)[:, None]
    cols = jnp.arange(wo)[None, :]
    border = (rows == 0) | (rows == ho - 1) | (cols == 0) | (cols == wo - 1)
    affine = jnp.where(border, b3.astype(f32)[0], cm + d)
    inner_mask = jnp.where(border, 0.0, 1.0).astype(f32)
    planes = jnp.stack([inner_mask, affine], axis=0)           # (2, ho, wo)

    kernel = partial(_fused_conv_kernel,
                     H=h, W=w, HO=ho, WO=wo, HP=hp, WP=wp,
                     XR0=xr0, XC0=xc0, K=k)

    out = pl.pallas_call(
        kernel,
        out_shape=jax.ShapeDtypeStruct((1, 1, ho, wo), f32),
        in_specs=[
            pl.BlockSpec(memory_space=pltpu.MemorySpace.VMEM),   # x
            pl.BlockSpec(memory_space=pltpu.MemorySpace.VMEM),   # planes
            pl.BlockSpec(memory_space=pltpu.MemorySpace.SMEM),   # a taps
        ],
        out_specs=pl.BlockSpec(memory_space=pltpu.MemorySpace.VMEM),
        scratch_shapes=[pltpu.VMEM((hp, wp), f32)],
    )(x.astype(f32), planes, a)
    return out


# Fold + pallas_call compiled as ONE program (removes eager dispatch overhead).
model_forward = jax.jit(_model_forward)


def reference(x, params):
    """Pure-JAX reference replicating the PyTorch forward."""
    w1, b1, w2, b2, w3, b3 = params

    def conv(inp, wgt, bias, pad):
        y = lax.conv_general_dilated(
            inp, wgt, (1, 1), ((pad, pad), (pad, pad)),
            dimension_numbers=("NCHW", "OIHW", "NCHW"),
            precision=lax.Precision.HIGHEST)
        return y + bias.reshape(1, -1, 1, 1)

    v1 = jnp.pad(x, ((0, 0), (0, 0), (0, 0), (2, 2)))
    v2 = conv(v1, w1, b1, 1)
    v3 = conv(v2, w2, b2, 2)
    v4 = conv(v3, w3, b3, 1)
    return jnp.maximum(v4, 0.0)


if __name__ == "__main__":
    key = jax.random.PRNGKey(0)
    kx, k1, k2, k3, k4, k5, k6 = jax.random.split(key, 7)

    # Input matching the module's example: (1, 1, 32, 32) NCHW.
    x = jax.random.normal(kx, (1, 1, 32, 32), dtype=jnp.float32)

    # Deterministic parameter init (PyTorch-style uniform(+-1/sqrt(fan_in))).
    b1_bound = 1.0
    b2_bound = 1.0 / (48 * 5 * 5) ** 0.5
    b3_bound = 1.0 / 48.0 ** 0.5
    w1 = jax.random.uniform(k1, (48, 1, 1, 1), jnp.float32, -b1_bound, b1_bound)
    b1 = jax.random.uniform(k2, (48,), jnp.float32, -b1_bound, b1_bound)
    w2 = jax.random.uniform(k3, (48, 48, 5, 5), jnp.float32, -b2_bound, b2_bound)
    b2 = jax.random.uniform(k4, (48,), jnp.float32, -b2_bound, b2_bound)
    w3 = jax.random.uniform(k5, (1, 48, 1, 1), jnp.float32, -b3_bound, b3_bound)
    b3 = jax.random.uniform(k6, (1,), jnp.float32, -b3_bound, b3_bound)
    params = (w1, b1, w2, b2, w3, b3)

    out = jax.block_until_ready(model_forward(x, params))
    ref = jax.block_until_ready(reference(x, params))
    assert out.shape == (1, 1, 36, 40), out.shape
    max_err = float(jnp.max(jnp.abs(out - ref)))
    if max_err < 1e-2:
        print("KERNEL_OK")
    else:
        print(f"MISMATCH max_abs_err={max_err}")
</pallas_src>

<mosaic_0001>
module attributes {stable_mosaic.version = 11 : i64} {
  func.func @_fused_conv_kernel(%arg0: memref<1x1x32x32xf32, #tpu.memory_space<vmem>>, %arg1: memref<2x36x40xf32, #tpu.memory_space<vmem>>, %arg2: memref<25xf32, #tpu.memory_space<smem>>, %arg3: memref<1x1x36x40xf32, #tpu.memory_space<vmem>>, %arg4: memref<40x44xf32, #tpu.memory_space<vmem>>) attributes {dimension_semantics = [], scalar_prefetch = 0 : i64, scratch_operands = 1 : i64, tpu.core_type = #tpu.core_type<tc>} {
    %cst = arith.constant 0.000000e+00 : f32
    %0 = vector.broadcast %cst : f32 to vector<40x44xf32>
    %c0 = arith.constant 0 : index
    %c0_0 = arith.constant 0 : index
    %1 = vector.load %arg4[%c0, %c0_0] : memref<40x44xf32, #tpu.memory_space<vmem>>, vector<40x44xf32>
    tpu.vector_store %arg4[%c0, %c0_0], %0 {strides = array<i32>} : memref<40x44xf32, #tpu.memory_space<vmem>>, vector<40x44xf32>,
    %c0_1 = arith.constant 0 : index
    %c0_2 = arith.constant 0 : index
    %c0_3 = arith.constant 0 : index
    %c0_4 = arith.constant 0 : index
    %2 = vector.load %arg0[%c0_1, %c0_2, %c0_3, %c0_4] : memref<1x1x32x32xf32, #tpu.memory_space<vmem>>, vector<1x1x32x32xf32>
    %3 = vector.shape_cast %2 : vector<1x1x32x32xf32> to vector<32x32xf32>
    %c4 = arith.constant 4 : index
    %c6 = arith.constant 6 : index
    %4 = vector.load %arg4[%c4, %c6] : memref<40x44xf32, #tpu.memory_space<vmem>>, vector<32x32xf32>
    tpu.vector_store %arg4[%c4, %c6], %3 {strides = array<i32>} : memref<40x44xf32, #tpu.memory_space<vmem>>, vector<32x32xf32>,
    %c0_5 = arith.constant 0 : index
    %c0_6 = arith.constant 0 : index
    %5 = vector.load %arg4[%c0_5, %c0_6] : memref<40x44xf32, #tpu.memory_space<vmem>>, vector<40x44xf32>
    %c0_7 = arith.constant 0 : index
    %6 = memref.load %arg2[%c0_7] : memref<25xf32, #tpu.memory_space<smem>>
    %7 = vector.extract_strided_slice %5 {offsets = [0, 0], sizes = [36, 40], strides = [1, 1]} : vector<40x44xf32> to vector<36x40xf32>
    %8 = vector.broadcast %6 : f32 to vector<36x40xf32>
    %9 = arith.mulf %8, %7 : vector<36x40xf32>
    %c1 = arith.constant 1 : index
    %10 = memref.load %arg2[%c1] : memref<25xf32, #tpu.memory_space<smem>>
    %11 = vector.extract_strided_slice %5 {offsets = [0, 1], sizes = [36, 40], strides = [1, 1]} : vector<40x44xf32> to vector<36x40xf32>
    %12 = vector.broadcast %10 : f32 to vector<36x40xf32>
    %13 = arith.mulf %12, %11 : vector<36x40xf32>
    %14 = arith.addf %9, %13 : vector<36x40xf32>
    %c2 = arith.constant 2 : index
    %15 = memref.load %arg2[%c2] : memref<25xf32, #tpu.memory_space<smem>>
    %16 = vector.extract_strided_slice %5 {offsets = [0, 2], sizes = [36, 40], strides = [1, 1]} : vector<40x44xf32> to vector<36x40xf32>
    %17 = vector.broadcast %15 : f32 to vector<36x40xf32>
    %18 = arith.mulf %17, %16 : vector<36x40xf32>
    %19 = arith.addf %14, %18 : vector<36x40xf32>
    %c3 = arith.constant 3 : index
    %20 = memref.load %arg2[%c3] : memref<25xf32, #tpu.memory_space<smem>>
    %21 = vector.extract_strided_slice %5 {offsets = [0, 3], sizes = [36, 40], strides = [1, 1]} : vector<40x44xf32> to vector<36x40xf32>
    %22 = vector.broadcast %20 : f32 to vector<36x40xf32>
    %23 = arith.mulf %22, %21 : vector<36x40xf32>
    %24 = arith.addf %19, %23 : vector<36x40xf32>
    %c4_8 = arith.constant 4 : index
    %25 = memref.load %arg2[%c4_8] : memref<25xf32, #tpu.memory_space<smem>>
    %26 = vector.extract_strided_slice %5 {offsets = [0, 4], sizes = [36, 40], strides = [1, 1]} : vector<40x44xf32> to vector<36x40xf32>
    %27 = vector.broadcast %25 : f32 to vector<36x40xf32>
    %28 = arith.mulf %27, %26 : vector<36x40xf32>
    %29 = arith.addf %24, %28 : vector<36x40xf32>
    %c5 = arith.constant 5 : index
    %30 = memref.load %arg2[%c5] : memref<25xf32, #tpu.memory_space<smem>>
    %31 = vector.extract_strided_slice %5 {offsets = [1, 0], sizes = [36, 40], strides = [1, 1]} : vector<40x44xf32> to vector<36x40xf32>
    %32 = vector.broadcast %30 : f32 to vector<36x40xf32>
    %33 = arith.mulf %32, %31 : vector<36x40xf32>
    %34 = arith.addf %29, %33 : vector<36x40xf32>
    %c6_9 = arith.constant 6 : index
    %35 = memref.load %arg2[%c6_9] : memref<25xf32, #tpu.memory_space<smem>>
    %36 = vector.extract_strided_slice %5 {offsets = [1, 1], sizes = [36, 40], strides = [1, 1]} : vector<40x44xf32> to vector<36x40xf32>
    %37 = vector.broadcast %35 : f32 to vector<36x40xf32>
    %38 = arith.mulf %37, %36 : vector<36x40xf32>
    %39 = arith.addf %34, %38 : vector<36x40xf32>
    %c7 = arith.constant 7 : index
    %40 = memref.load %arg2[%c7] : memref<25xf32, #tpu.memory_space<smem>>
    %41 = vector.extract_strided_slice %5 {offsets = [1, 2], sizes = [36, 40], strides = [1, 1]} : vector<40x44xf32> to vector<36x40xf32>
    %42 = vector.broadcast %40 : f32 to vector<36x40xf32>
    %43 = arith.mulf %42, %41 : vector<36x40xf32>
    %44 = arith.addf %39, %43 : vector<36x40xf32>
    %c8 = arith.constant 8 : index
    %45 = memref.load %arg2[%c8] : memref<25xf32, #tpu.memory_space<smem>>
    %46 = vector.extract_strided_slice %5 {offsets = [1, 3], sizes = [36, 40], strides = [1, 1]} : vector<40x44xf32> to vector<36x40xf32>
    %47 = vector.broadcast %45 : f32 to vector<36x40xf32>
    %48 = arith.mulf %47, %46 : vector<36x40xf32>
    %49 = arith.addf %44, %48 : vector<36x40xf32>
    %c9 = arith.constant 9 : index
    %50 = memref.load %arg2[%c9] : memref<25xf32, #tpu.memory_space<smem>>
    %51 = vector.extract_strided_slice %5 {offsets = [1, 4], sizes = [36, 40], strides = [1, 1]} : vector<40x44xf32> to vector<36x40xf32>
    %52 = vector.broadcast %50 : f32 to vector<36x40xf32>
    %53 = arith.mulf %52, %51 : vector<36x40xf32>
    %54 = arith.addf %49, %53 : vector<36x40xf32>
    %c10 = arith.constant 10 : index
    %55 = memref.load %arg2[%c10] : memref<25xf32, #tpu.memory_space<smem>>
    %56 = vector.extract_strided_slice %5 {offsets = [2, 0], sizes = [36, 40], strides = [1, 1]} : vector<40x44xf32> to vector<36x40xf32>
    %57 = vector.broadcast %55 : f32 to vector<36x40xf32>
    %58 = arith.mulf %57, %56 : vector<36x40xf32>
    %59 = arith.addf %54, %58 : vector<36x40xf32>
    %c11 = arith.constant 11 : index
    %60 = memref.load %arg2[%c11] : memref<25xf32, #tpu.memory_space<smem>>
    %61 = vector.extract_strided_slice %5 {offsets = [2, 1], sizes = [36, 40], strides = [1, 1]} : vector<40x44xf32> to vector<36x40xf32>
    %62 = vector.broadcast %60 : f32 to vector<36x40xf32>
    %63 = arith.mulf %62, %61 : vector<36x40xf32>
    %64 = arith.addf %59, %63 : vector<36x40xf32>
    %c12 = arith.constant 12 : index
    %65 = memref.load %arg2[%c12] : memref<25xf32, #tpu.memory_space<smem>>
    %66 = vector.extract_strided_slice %5 {offsets = [2, 2], sizes = [36, 40], strides = [1, 1]} : vector<40x44xf32> to vector<36x40xf32>
    %67 = vector.broadcast %65 : f32 to vector<36x40xf32>
    %68 = arith.mulf %67, %66 : vector<36x40xf32>
    %69 = arith.addf %64, %68 : vector<36x40xf32>
    %c13 = arith.constant 13 : index
    %70 = memref.load %arg2[%c13] : memref<25xf32, #tpu.memory_space<smem>>
    %71 = vector.extract_strided_slice %5 {offsets = [2, 3], sizes = [36, 40], strides = [1, 1]} : vector<40x44xf32> to vector<36x40xf32>
    %72 = vector.broadcast %70 : f32 to vector<36x40xf32>
    %73 = arith.mulf %72, %71 : vector<36x40xf32>
    %74 = arith.addf %69, %73 : vector<36x40xf32>
    %c14 = arith.constant 14 : index
    %75 = memref.load %arg2[%c14] : memref<25xf32, #tpu.memory_space<smem>>
    %76 = vector.extract_strided_slice %5 {offsets = [2, 4], sizes = [36, 40], strides = [1, 1]} : vector<40x44xf32> to vector<36x40xf32>
    %77 = vector.broadcast %75 : f32 to vector<36x40xf32>
    %78 = arith.mulf %77, %76 : vector<36x40xf32>
    %79 = arith.addf %74, %78 : vector<36x40xf32>
    %c15 = arith.constant 15 : index
    %80 = memref.load %arg2[%c15] : memref<25xf32, #tpu.memory_space<smem>>
    %81 = vector.extract_strided_slice %5 {offsets = [3, 0], sizes = [36, 40], strides = [1, 1]} : vector<40x44xf32> to vector<36x40xf32>
    %82 = vector.broadcast %80 : f32 to vector<36x40xf32>
    %83 = arith.mulf %82, %81 : vector<36x40xf32>
    %84 = arith.addf %79, %83 : vector<36x40xf32>
    %c16 = arith.constant 16 : index
    %85 = memref.load %arg2[%c16] : memref<25xf32, #tpu.memory_space<smem>>
    %86 = vector.extract_strided_slice %5 {offsets = [3, 1], sizes = [36, 40], strides = [1, 1]} : vector<40x44xf32> to vector<36x40xf32>
    %87 = vector.broadcast %85 : f32 to vector<36x40xf32>
    %88 = arith.mulf %87, %86 : vector<36x40xf32>
    %89 = arith.addf %84, %88 : vector<36x40xf32>
    %c17 = arith.constant 17 : index
    %90 = memref.load %arg2[%c17] : memref<25xf32, #tpu.memory_space<smem>>
    %91 = vector.extract_strided_slice %5 {offsets = [3, 2], sizes = [36, 40], strides = [1, 1]} : vector<40x44xf32> to vector<36x40xf32>
    %92 = vector.broadcast %90 : f32 to vector<36x40xf32>
    %93 = arith.mulf %92, %91 : vector<36x40xf32>
    %94 = arith.addf %89, %93 : vector<36x40xf32>
    %c18 = arith.constant 18 : index
    %95 = memref.load %arg2[%c18] : memref<25xf32, #tpu.memory_space<smem>>
    %96 = vector.extract_strided_slice %5 {offsets = [3, 3], sizes = [36, 40], strides = [1, 1]} : vector<40x44xf32> to vector<36x40xf32>
    %97 = vector.broadcast %95 : f32 to vector<36x40xf32>
    %98 = arith.mulf %97, %96 : vector<36x40xf32>
    %99 = arith.addf %94, %98 : vector<36x40xf32>
    %c19 = arith.constant 19 : index
    %100 = memref.load %arg2[%c19] : memref<25xf32, #tpu.memory_space<smem>>
    %101 = vector.extract_strided_slice %5 {offsets = [3, 4], sizes = [36, 40], strides = [1, 1]} : vector<40x44xf32> to vector<36x40xf32>
    %102 = vector.broadcast %100 : f32 to vector<36x40xf32>
    %103 = arith.mulf %102, %101 : vector<36x40xf32>
    %104 = arith.addf %99, %103 : vector<36x40xf32>
    %c20 = arith.constant 20 : index
    %105 = memref.load %arg2[%c20] : memref<25xf32, #tpu.memory_space<smem>>
    %106 = vector.extract_strided_slice %5 {offsets = [4, 0], sizes = [36, 40], strides = [1, 1]} : vector<40x44xf32> to vector<36x40xf32>
    %107 = vector.broadcast %105 : f32 to vector<36x40xf32>
    %108 = arith.mulf %107, %106 : vector<36x40xf32>
    %109 = arith.addf %104, %108 : vector<36x40xf32>
    %c21 = arith.constant 21 : index
    %110 = memref.load %arg2[%c21] : memref<25xf32, #tpu.memory_space<smem>>
    %111 = vector.extract_strided_slice %5 {offsets = [4, 1], sizes = [36, 40], strides = [1, 1]} : vector<40x44xf32> to vector<36x40xf32>
    %112 = vector.broadcast %110 : f32 to vector<36x40xf32>
    %113 = arith.mulf %112, %111 : vector<36x40xf32>
    %114 = arith.addf %109, %113 : vector<36x40xf32>
    %c22 = arith.constant 22 : index
    %115 = memref.load %arg2[%c22] : memref<25xf32, #tpu.memory_space<smem>>
    %116 = vector.extract_strided_slice %5 {offsets = [4, 2], sizes = [36, 40], strides = [1, 1]} : vector<40x44xf32> to vector<36x40xf32>
    %117 = vector.broadcast %115 : f32 to vector<36x40xf32>
    %118 = arith.mulf %117, %116 : vector<36x40xf32>
    %119 = arith.addf %114, %118 : vector<36x40xf32>
    %c23 = arith.constant 23 : index
    %120 = memref.load %arg2[%c23] : memref<25xf32, #tpu.memory_space<smem>>
    %121 = vector.extract_strided_slice %5 {offsets = [4, 3], sizes = [36, 40], strides = [1, 1]} : vector<40x44xf32> to vector<36x40xf32>
    %122 = vector.broadcast %120 : f32 to vector<36x40xf32>
    %123 = arith.mulf %122, %121 : vector<36x40xf32>
    %124 = arith.addf %119, %123 : vector<36x40xf32>
    %c24 = arith.constant 24 : index
    %125 = memref.load %arg2[%c24] : memref<25xf32, #tpu.memory_space<smem>>
    %126 = vector.extract_strided_slice %5 {offsets = [4, 4], sizes = [36, 40], strides = [1, 1]} : vector<40x44xf32> to vector<36x40xf32>
    %127 = vector.broadcast %125 : f32 to vector<36x40xf32>
    %128 = arith.mulf %127, %126 : vector<36x40xf32>
    %129 = arith.addf %124, %128 : vector<36x40xf32>
    %c0_10 = arith.constant 0 : index
    %c0_11 = arith.constant 0 : index
    %c0_12 = arith.constant 0 : index
    %130 = vector.load %arg1[%c0_10, %c0_11, %c0_12] : memref<2x36x40xf32, #tpu.memory_space<vmem>>, vector<1x36x40xf32>
    %131 = vector.shape_cast %130 : vector<1x36x40xf32> to vector<36x40xf32>
    %c1_13 = arith.constant 1 : index
    %c0_14 = arith.constant 0 : index
    %c0_15 = arith.constant 0 : index
    %132 = vector.load %arg1[%c1_13, %c0_14, %c0_15] : memref<2x36x40xf32, #tpu.memory_space<vmem>>, vector<1x36x40xf32>
    %133 = vector.shape_cast %132 : vector<1x36x40xf32> to vector<36x40xf32>
    %134 = arith.mulf %129, %131 : vector<36x40xf32>
    %135 = arith.addf %134, %133 : vector<36x40xf32>
    %cst_16 = arith.constant 0.000000e+00 : f32
    %136 = vector.broadcast %cst_16 : f32 to vector<36x40xf32>
    %137 = arith.maximumf %135, %136 : vector<36x40xf32>
    %c0_17 = arith.constant 0 : index
    %c0_18 = arith.constant 0 : index
    %c0_19 = arith.constant 0 : index
    %c0_20 = arith.constant 0 : index
    %138 = vector.load %arg3[%c0_17, %c0_18, %c0_19, %c0_20] : memref<1x1x36x40xf32, #tpu.memory_space<vmem>>, vector<1x1x36x40xf32>
    %139 = vector.shape_cast %138 : vector<1x1x36x40xf32> to vector<36x40xf32>
    %140 = vector.shape_cast %137 : vector<36x40xf32> to vector<1x1x36x40xf32>
    tpu.vector_store %arg3[%c0_17, %c0_18, %c0_19, %c0_20], %140 {strides = array<i32>} : memref<1x1x36x40xf32, #tpu.memory_space<vmem>>, vector<1x1x36x40xf32>,
    return
  }
}

</mosaic_0001>

<llo_original>
// kernel: squeeze.5
$region0: #{squeeze.5}
  %s0 = inlined_call_operand.vmem [shape: f32[5,5], index: 0, kind: input, shape index: {}]
  %s1 = inlined_call_operand.vmem [shape: f32[25], index: 1, kind: output, shape index: {}]
  $region1: #{squeeze.5} parent=0
    #allocation0 [shape = 'u8[4096]{0}', space=vmem, size = 0x1000, scoped, tag = 'scoped mem for output reshape']
    %v2 = vld [vmem:[%s0] sm:$0x1]
    %vm3 = vcmask 39936
    %4 = vst.msk [vmem:[#allocation0] sm:$0x1] %vm3, %v2
    %s5 = scalar_lea.vmem %s0, 4
    %v6 = vld [vmem:[%s5] sm:$0x1]
    %7 = vrot.lane.b32.xlu0 %v6, 20
    %v8 = vpop.permute.xlu0 %7
    %vm9 = vcmask 203936
    %10 = vst.msk [vmem:[#allocation0] sm:$0x1] %vm9, %v8
    %s11 = scalar_lea.vmem %s0, 3
    %v12 = vld [vmem:[%s11] sm:$0x1]
    %13 = vrot.lane.b32.xlu0 %v12, 15
    %v14 = vpop.permute.xlu0 %13
    %vm15 = vcmask 162936
    %16 = vst.msk [vmem:[#allocation0] sm:$0x1] %vm15, %v14
    %s17 = scalar_lea.vmem %s0, 2
    %v18 = vld [vmem:[%s17] sm:$0x1]
    %19 = vrot.lane.b32.xlu0 %v18, 10
    %v20 = vpop.permute.xlu0 %19
    %vm21 = vcmask 121936
    %22 = vst.msk [vmem:[#allocation0] sm:$0x1] %vm21, %v20
    %s23 = scalar_lea.vmem %s0, 1
    %v24 = vld [vmem:[%s23] sm:$0x1]
    %25 = vrot.lane.b32.xlu0 %v24, 5
    %v26 = vpop.permute.xlu0 %25
    %vm27 = vcmask 80936
    %28 = vst.msk [vmem:[#allocation0] sm:$0x1] %vm27, %v26
    %s30 = ssub.s32 2, 1
    %v31 = vld [vmem:[#allocation0] sm:%s30]
    %s33 = ssub.s32 2, 1
    %34 = vst [vmem:[%s1] sm:%s33] %v31

// kernel: _model_forward.1
$region0: #{_model_forward.1}
  #allocation0 [shape = 'u32[]', space=smem, size = 0x4, offset = 0x4, fixed_abs, tag = 'smem constant byte address 0x4 - core index']
  #allocation1 [shape = 'u32[72,128]{1,0:T(1,128)}', space=vmem, size = 0x9000, scoped, tag = 'internal scratch']
  #allocation2 [shape = 'f32[40,44]{1,0:T(8,128)}', space=vmem, size = 0x5000, scoped, tag = 'scratch operand']
  %s0 = inlined_call_operand.vmem [shape: f32[1,1,32,32], index: 0, kind: input, shape index: {}]
  %s1 = inlined_call_operand.vmem [shape: f32[2,36,40], index: 1, kind: input, shape index: {}]
  %s2 = inlined_call_operand.vmem [shape: f32[25], index: 2, kind: input, shape index: {}]
  %s3 = inlined_call_operand.vmem [shape: f32[1,1,36,40], index: 3, kind: output, shape index: {}]
  %s4 = sld [smem:[#allocation0]]
  $region26: #{_model_forward.1} parent=0
    _
  %s6 = ssub.s32 1, %s4
  %s7 = scalar_select 0, %s6, %s4
  $region1: #{_model_forward.1} parent=0
    #allocation3 [shape = 'u8[512]{0}', space=smem, size = 0x200, scoped, tag = 'input window, operand 2, single buffered']
    #allocation4 [shape = 's32[1]{0}', space=sflag, size = 0x4, scoped, tag = 'scoped memory for _model_forward.1']
    %8 = vsyncpa [#allocation4], 0
    // Predicated region
    $region2: #{_model_forward.1} parent=1 // pred_check
      _
    $region3: #{_model_forward.1} parent=1 // pred_check_branch
      %10 = sbr.rel (0) target = $region5
    $region4: #{_model_forward.1} parent=1 // pred_region
      _
    $region5: #{_model_forward.1} parent=1 // pred_fallthru
      _
    // Predicated region
    $region6: #{_model_forward.1} parent=1 // pred_check
      _
    $region7: #{_model_forward.1} parent=1 // pred_check_branch
      %12 = sbr.rel (0) target = $region9
    $region8: #{_model_forward.1} parent=1 // pred_region
      _
    $region9: #{_model_forward.1} parent=1 // pred_fallthru
      _
    // Predicated region
    $region10: #{_model_forward.1} parent=1 // pred_check
      _
    $region11: #{_model_forward.1} parent=1 // pred_check_branch
      %14 = sbr.rel (0) target = $region13
    $region12: #{_model_forward.1} parent=1 // pred_region
      %16 = vsyncadd [#allocation4], 0
      %s18 = sshll.u32 %s2, 4
      %s19 = int_to_ptr.vmem [resolvable:$true] %s18
      %21 = dma.vmem_to_smem %s19, 16, [#allocation3], [#allocation4]
    $region13: #{_model_forward.1} parent=1 // pred_fallthru
      _
    // Predicated region
    $region14: #{_model_forward.1} parent=1 // pred_check
      _
    $region15: #{_model_forward.1} parent=1 // pred_check_branch
      %23 = sbr.rel (0) target = $region17
    $region16: #{_model_forward.1} parent=1 // pred_region
      %25 = dma.done [#allocation4], 16
    $region17: #{_model_forward.1} parent=1 // pred_fallthru
      _
    %26 = sfence
    %vm27 = vcmask 359424
    %28 = vst.msk [vmem:[#allocation2] sm:$0xff] %vm27, 0.0
    %29 = vst.msk [vmem:[#allocation2 + $0x8] sm:$0xff] %vm27, 0.0
    %30 = vst.msk [vmem:[#allocation2 + $0x10] sm:$0xff] %vm27, 0.0
    %31 = vst.msk [vmem:[#allocation2 + $0x18] sm:$0xff] %vm27, 0.0
    %32 = vst.msk [vmem:[#allocation2 + $0x20] sm:$0xff] %vm27, 0.0
    %v33 = vld [vmem:[%s0] sm:$0xff]
    %v34 = vld [vmem:[%s0 + $0x8] sm:$0xff]
    %v35 = vld [vmem:[%s0 + $0x10] sm:$0xff]
    %v36 = vld [vmem:[%s0 + $0x18] sm:$0xff]
    %41 = vrot.lane.b32.xlu0 %v33, 6
    %v42 = vpop.permute.xlu0 %41
    %43 = vrot.lane.b32.xlu0 %v34, 6
    %v44 = vpop.permute.xlu0 %43
    %45 = vrot.lane.b32.xlu0 %v35, 6
    %v46 = vpop.permute.xlu0 %45
    %47 = vrot.lane.b32.xlu0 %v36, 6
    %v48 = vpop.permute.xlu0 %47
    %vm53 = vcmask 310320
    %54 = vst.msk [vmem:[#allocation2 + $0x4] sm:$0xff] %vm53, %v42
    %55 = vst.msk [vmem:[#allocation2 + $0xc] sm:$0xff] %vm53, %v44
    %56 = vst.msk [vmem:[#allocation2 + $0x14] sm:$0xff] %vm53, %v46
    %57 = vst.msk [vmem:[#allocation2 + $0x1c] sm:$0xff] %vm53, %v48
    %v58 = vld [vmem:[#allocation2] sm:$0xff]
    %v59 = vld [vmem:[#allocation2 + $0x8] sm:$0xff]
    %v60 = vld [vmem:[#allocation2 + $0x10] sm:$0xff]
    %v61 = vld [vmem:[#allocation2 + $0x18] sm:$0xff]
    %v62 = vld [vmem:[#allocation2 + $0x20] sm:$0xff]
    %s63 = sld [smem:[#allocation3]]
    %v64 = vstv %s63
    %v65 = vmul.f32 %v64, %v58
    %v66 = vmul.f32 %v64, %v59
    %v67 = vmul.f32 %v64, %v60
    %v68 = vmul.f32 %v64, %v61
    %v69 = vmul.f32 %v64, %v62
    %s70 = sld [smem:[#allocation3 + $0x1]]
    %v71 = vstv %s70
    %v72 = vmul.f32 %v71, %v58
    %v73 = vmul.f32 %v71, %v59
    %v74 = vmul.f32 %v71, %v60
    %v75 = vmul.f32 %v71, %v61
    %v76 = vmul.f32 %v71, %v62
    %82 = vrot.lane.b32.xlu0 %v72, 127
    %v83 = vpop.permute.xlu0 %82
    %84 = vrot.lane.b32.xlu0 %v73, 127
    %v85 = vpop.permute.xlu0 %84
    %86 = vrot.lane.b32.xlu0 %v74, 127
    %v87 = vpop.permute.xlu0 %86
    %88 = vrot.lane.b32.xlu0 %v75, 127
    %v89 = vpop.permute.xlu0 %88
    %90 = vrot.lane.b32.xlu0 %v76, 127
    %v91 = vpop.permute.xlu0 %90
    %v97 = vadd.f32 %v65, %v83
    %v98 = vadd.f32 %v66, %v85
    %v99 = vadd.f32 %v67, %v87
    %v100 = vadd.f32 %v68, %v89
    %v101 = vadd.f32 %v69, %v91
    %s102 = sld [smem:[#allocation3 + $0x2]]
    %v103 = vstv %s102
    %v104 = vmul.f32 %v103, %v58
    %v105 = vmul.f32 %v103, %v59
    %v106 = vmul.f32 %v103, %v60
    %v107 = vmul.f32 %v103, %v61
    %v108 = vmul.f32 %v103, %v62
    %114 = vrot.lane.b32.xlu0 %v104, 126
    %v115 = vpop.permute.xlu0 %114
    %116 = vrot.lane.b32.xlu0 %v105, 126
    %v117 = vpop.permute.xlu0 %116
    %118 = vrot.lane.b32.xlu0 %v106, 126
    %v119 = vpop.permute.xlu0 %118
    %120 = vrot.lane.b32.xlu0 %v107, 126
    %v121 = vpop.permute.xlu0 %120
    %122 = vrot.lane.b32.xlu0 %v108, 126
    %v123 = vpop.permute.xlu0 %122
    %v129 = vadd.f32 %v97, %v115
    %v130 = vadd.f32 %v98, %v117
    %v131 = vadd.f32 %v99, %v119
    %v132 = vadd.f32 %v100, %v121
    %v133 = vadd.f32 %v101, %v123
    %s134 = sld [smem:[#allocation3 + $0x3]]
    %v135 = vstv %s134
    %v136 = vmul.f32 %v135, %v58
    %v137 = vmul.f32 %v135, %v59
    %v138 = vmul.f32 %v135, %v60
    %v139 = vmul.f32 %v135, %v61
    %v140 = vmul.f32 %v135, %v62
    %146 = vrot.lane.b32.xlu0 %v136, 125
    %v147 = vpop.permute.xlu0 %146
    %148 = vrot.lane.b32.xlu0 %v137, 125
    %v149 = vpop.permute.xlu0 %148
    %150 = vrot.lane.b32.xlu0 %v138, 125
    %v151 = vpop.permute.xlu0 %150
    %152 = vrot.lane.b32.xlu0 %v139, 125
    %v153 = vpop.permute.xlu0 %152
    %154 = vrot.lane.b32.xlu0 %v140, 125
    %v155 = vpop.permute.xlu0 %154
    %v161 = vadd.f32 %v129, %v147
    %v162 = vadd.f32 %v130, %v149
    %v163 = vadd.f32 %v131, %v151
    %v164 = vadd.f32 %v132, %v153
    %v165 = vadd.f32 %v133, %v155
    %s166 = sld [smem:[#allocation3 + $0x4]]
    %v167 = vstv %s166
    %v168 = vmul.f32 %v167, %v58
    %v169 = vmul.f32 %v167, %v59
    %v170 = vmul.f32 %v167, %v60
    %v171 = vmul.f32 %v167, %v61
    %v172 = vmul.f32 %v167, %v62
    %178 = vrot.lane.b32.xlu0 %v168, 124
    %v179 = vpop.permute.xlu0 %178
    %180 = vrot.lane.b32.xlu0 %v169, 124
    %v181 = vpop.permute.xlu0 %180
    %182 = vrot.lane.b32.xlu0 %v170, 124
    %v183 = vpop.permute.xlu0 %182
    %184 = vrot.lane.b32.xlu0 %v171, 124
    %v185 = vpop.permute.xlu0 %184
    %186 = vrot.lane.b32.xlu0 %v172, 124
    %v187 = vpop.permute.xlu0 %186
    %v193 = vadd.f32 %v161, %v179
    %v194 = vadd.f32 %v162, %v181
    %v195 = vadd.f32 %v163, %v183
    %v196 = vadd.f32 %v164, %v185
    %v197 = vadd.f32 %v165, %v187
    %s198 = sld [smem:[#allocation3 + $0x5]]
    %v199 = vstv %s198
    %v200 = vmul.f32 %v199, %v58
    %v201 = vmul.f32 %v199, %v59
    %v202 = vmul.f32 %v199, %v60
    %v203 = vmul.f32 %v199, %v61
    %v204 = vmul.f32 %v199, %v62
    %vm210 = vcmask 1046528
    %v211 = vrot.slane %v200, 1
    %v212 = vrot.slane %v201, 1
    %v213 = vsel %vm210, %v211, %v212
    %v214 = vrot.slane %v202, 1
    %v215 = vsel %vm210, %v212, %v214
    %v216 = vrot.slane %v203, 1
    %v217 = vsel %vm210, %v214, %v216
    %v218 = vrot.slane %v204, 1
    %v219 = vsel %vm210, %v216, %v218
    %v225 = vadd.f32 %v193, %v213
    %v226 = vadd.f32 %v194, %v215
    %v227 = vadd.f32 %v195, %v217
    %v228 = vadd.f32 %v196, %v219
    %v229 = vadd.f32 %v197, %v218
    %s230 = sld [smem:[#allocation3 + $0x6]]
    %v231 = vstv %s230
    %v232 = vmul.f32 %v231, %v58
    %v233 = vmul.f32 %v231, %v59
    %v234 = vmul.f32 %v231, %v60
    %v235 = vmul.f32 %v231, %v61
    %v236 = vmul.f32 %v231, %v62
    %v242 = vrot.slane %v232, 1
    %v243 = vrot.slane %v233, 1
    %v244 = vsel %vm210, %v242, %v243
    %v245 = vrot.slane %v234, 1
    %v246 = vsel %vm210, %v243, %v245
    %v247 = vrot.slane %v235, 1
    %v248 = vsel %vm210, %v245, %v247
    %v249 = vrot.slane %v236, 1
    %v250 = vsel %vm210, %v247, %v249
    %251 = vrot.lane.b32.xlu0 %v244, 127
    %v252 = vpop.permute.xlu0 %251
    %253 = vrot.lane.b32.xlu0 %v246, 127
    %v254 = vpop.permute.xlu0 %253
    %255 = vrot.lane.b32.xlu0 %v248, 127
    %v256 = vpop.permute.xlu0 %255
    %257 = vrot.lane.b32.xlu0 %v250, 127
    %v258 = vpop.permute.xlu0 %257
    %259 = vrot.lane.b32.xlu0 %v249, 127
    %v260 = vpop.permute.xlu0 %259
    %v266 = vadd.f32 %v225, %v252
    %v267 = vadd.f32 %v226, %v254
    %v268 = vadd.f32 %v227, %v256
    %v269 = vadd.f32 %v228, %v258
    %v270 = vadd.f32 %v229, %v260
    %s271 = sld [smem:[#allocation3 + $0x7]]
    %v272 = vstv %s271
    %v273 = vmul.f32 %v272, %v58
    %v274 = vmul.f32 %v272, %v59
    %v275 = vmul.f32 %v272, %v60
    %v276 = vmul.f32 %v272, %v61
    %v277 = vmul.f32 %v272, %v62
    %v283 = vrot.slane %v273, 1
    %v284 = vrot.slane %v274, 1
    %v285 = vsel %vm210, %v283, %v284
    %v286 = vrot.slane %v275, 1
    %v287 = vsel %vm210, %v284, %v286
    %v288 = vrot.slane %v276, 1
    %v289 = vsel %vm210, %v286, %v288
    %v290 = vrot.slane %v277, 1
    %v291 = vsel %vm210, %v288, %v290
    %292 = vrot.lane.b32.xlu0 %v285, 126
    %v293 = vpop.permute.xlu0 %292
    %294 = vrot.lane.b32.xlu0 %v287, 126
    %v295 = vpop.permute.xlu0 %294
    %296 = vrot.lane.b32.xlu0 %v289, 126
    %v297 = vpop.permute.xlu0 %296
    %298 = vrot.lane.b32.xlu0 %v291, 126
    %v299 = vpop.permute.xlu0 %298
    %300 = vrot.lane.b32.xlu0 %v290, 126
    %v301 = vpop.permute.xlu0 %300
    %v307 = vadd.f32 %v266, %v293
    %v308 = vadd.f32 %v267, %v295
    %v309 = vadd.f32 %v268, %v297
    %v310 = vadd.f32 %v269, %v299
    %v311 = vadd.f32 %v270, %v301
    %s312 = sld [smem:[#allocation3 + $0x8]]
    %v313 = vstv %s312
    %v314 = vmul.f32 %v313, %v58
    %v315 = vmul.f32 %v313, %v59
    %v316 = vmul.f32 %v313, %v60
    %v317 = vmul.f32 %v313, %v61
    %v318 = vmul.f32 %v313, %v62
    %v324 = vrot.slane %v314, 1
    %v325 = vrot.slane %v315, 1
    %v326 = vsel %vm210, %v324, %v325
    %v327 = vrot.slane %v316, 1
    %v328 = vsel %vm210, %v325, %v327
    %v329 = vrot.slane %v317, 1
    %v330 = vsel %vm210, %v327, %v329
    %v331 = vrot.slane %v318, 1
    %v332 = vsel %vm210, %v329, %v331
    %333 = vrot.lane.b32.xlu0 %v326, 125
    %v334 = vpop.permute.xlu0 %333
    %335 = vrot.lane.b32.xlu0 %v328, 125
    %v336 = vpop.permute.xlu0 %335
    %337 = vrot.lane.b32.xlu0 %v330, 125
    %v338 = vpop.permute.xlu0 %337
    %339 = vrot.lane.b32.xlu0 %v332, 125
    %v340 = vpop.permute.xlu0 %339
    %341 = vrot.lane.b32.xlu0 %v331, 125
    %v342 = vpop.permute.xlu0 %341
    %v348 = vadd.f32 %v307, %v334
    %v349 = vadd.f32 %v308, %v336
    %v350 = vadd.f32 %v309, %v338
    %v351 = vadd.f32 %v310, %v340
    %v352 = vadd.f32 %v311, %v342
    %s353 = sld [smem:[#allocation3 + $0x9]]
    %v354 = vstv %s353
    %v355 = vmul.f32 %v354, %v58
    %v356 = vmul.f32 %v354, %v59
    %v357 = vmul.f32 %v354, %v60
    %v358 = vmul.f32 %v354, %v61
    %v359 = vmul.f32 %v354, %v62
    %v365 = vrot.slane %v355, 1
    %v366 = vrot.slane %v356, 1
    %v367 = vsel %vm210, %v365, %v366
    %v368 = vrot.slane %v357, 1
    %v369 = vsel %vm210, %v366, %v368
    %v370 = vrot.slane %v358, 1
    %v371 = vsel %vm210, %v368, %v370
    %v372 = vrot.slane %v359, 1
    %v373 = vsel %vm210, %v370, %v372
    %374 = vrot.lane.b32.xlu0 %v367, 124
    %v375 = vpop.permute.xlu0 %374
    %376 = vrot.lane.b32.xlu0 %v369, 124
    %v377 = vpop.permute.xlu0 %376
    %378 = vrot.lane.b32.xlu0 %v371, 124
    %v379 = vpop.permute.xlu0 %378
    %380 = vrot.lane.b32.xlu0 %v373, 124
    %v381 = vpop.permute.xlu0 %380
    %382 = vrot.lane.b32.xlu0 %v372, 124
    %v383 = vpop.permute.xlu0 %382
    %v389 = vadd.f32 %v348, %v375
    %v390 = vadd.f32 %v349, %v377
    %v391 = vadd.f32 %v350, %v379
    %v392 = vadd.f32 %v351, %v381
    %v393 = vadd.f32 %v352, %v383
    %s394 = sld [smem:[#allocation3 + $0xa]]
    %v395 = vstv %s394
    %v396 = vmul.f32 %v395, %v58
    %v397 = vmul.f32 %v395, %v59
    %v398 = vmul.f32 %v395, %v60
    %v399 = vmul.f32 %v395, %v61
    %v400 = vmul.f32 %v395, %v62
    %vm406 = vcmask 1045504
    %v407 = vrot.slane %v396, 2
    %v408 = vrot.slane %v397, 2
    %v409 = vsel %vm406, %v407, %v408
    %v410 = vrot.slane %v398, 2
    %v411 = vsel %vm406, %v408, %v410
    %v412 = vrot.slane %v399, 2
    %v413 = vsel %vm406, %v410, %v412
    %v414 = vrot.slane %v400, 2
    %v415 = vsel %vm406, %v412, %v414
    %v421 = vadd.f32 %v389, %v409
    %v422 = vadd.f32 %v390, %v411
    %v423 = vadd.f32 %v391, %v413
    %v424 = vadd.f32 %v392, %v415
    %v425 = vadd.f32 %v393, %v414
    %s426 = sld [smem:[#allocation3 + $0xb]]
    %v427 = vstv %s426
    %v428 = vmul.f32 %v427, %v58
    %v429 = vmul.f32 %v427, %v59
    %v430 = vmul.f32 %v427, %v60
    %v431 = vmul.f32 %v427, %v61
    %v432 = vmul.f32 %v427, %v62
    %v438 = vrot.slane %v428, 2
    %v439 = vrot.slane %v429, 2
    %v440 = vsel %vm406, %v438, %v439
    %v441 = vrot.slane %v430, 2
    %v442 = vsel %vm406, %v439, %v441
    %v443 = vrot.slane %v431, 2
    %v444 = vsel %vm406, %v441, %v443
    %v445 = vrot.slane %v432, 2
    %v446 = vsel %vm406, %v443, %v445
    %447 = vrot.lane.b32.xlu0 %v440, 127
    %v448 = vpop.permute.xlu0 %447
    %449 = vrot.lane.b32.xlu0 %v442, 127
    %v450 = vpop.permute.xlu0 %449
    %451 = vrot.lane.b32.xlu0 %v444, 127
    %v452 = vpop.permute.xlu0 %451
    %453 = vrot.lane.b32.xlu0 %v446, 127
    %v454 = vpop.permute.xlu0 %453
    %455 = vrot.lane.b32.xlu0 %v445, 127
    %v456 = vpop.permute.xlu0 %455
    %v462 = vadd.f32 %v421, %v448
    %v463 = vadd.f32 %v422, %v450
    %v464 = vadd.f32 %v423, %v452
    %v465 = vadd.f32 %v424, %v454
    %v466 = vadd.f32 %v425, %v456
    %s467 = sld [smem:[#allocation3 + $0xc]]
    %v468 = vstv %s467
    %v469 = vmul.f32 %v468, %v58
    %v470 = vmul.f32 %v468, %v59
    %v471 = vmul.f32 %v468, %v60
    %v472 = vmul.f32 %v468, %v61
    %v473 = vmul.f32 %v468, %v62
    %v479 = vrot.slane %v469, 2
    %v480 = vrot.slane %v470, 2
    %v481 = vsel %vm406, %v479, %v480
    %v482 = vrot.slane %v471, 2
    %v483 = vsel %vm406, %v480, %v482
    %v484 = vrot.slane %v472, 2
    %v485 = vsel %vm406, %v482, %v484
    %v486 = vrot.slane %v473, 2
    %v487 = vsel %vm406, %v484, %v486
    %488 = vrot.lane.b32.xlu0 %v481, 126
    %v489 = vpop.permute.xlu0 %488
    %490 = vrot.lane.b32.xlu0 %v483, 126
    %v491 = vpop.permute.xlu0 %490
    %492 = vrot.lane.b32.xlu0 %v485, 126
    %v493 = vpop.permute.xlu0 %492
    %494 = vrot.lane.b32.xlu0 %v487, 126
    %v495 = vpop.permute.xlu0 %494
    %496 = vrot.lane.b32.xlu0 %v486, 126
    %v497 = vpop.permute.xlu0 %496
    %v503 = vadd.f32 %v462, %v489
    %v504 = vadd.f32 %v463, %v491
    %v505 = vadd.f32 %v464, %v493
    %v506 = vadd.f32 %v465, %v495
    %v507 = vadd.f32 %v466, %v497
    %s508 = sld [smem:[#allocation3 + $0xd]]
    %v509 = vstv %s508
    %v510 = vmul.f32 %v509, %v58
    %v511 = vmul.f32 %v509, %v59
    %v512 = vmul.f32 %v509, %v60
    %v513 = vmul.f32 %v509, %v61
    %v514 = vmul.f32 %v509, %v62
    %v520 = vrot.slane %v510, 2
    %v521 = vrot.slane %v511, 2
    %v522 = vsel %vm406, %v520, %v521
    %v523 = vrot.slane %v512, 2
    %v524 = vsel %vm406, %v521, %v523
    %v525 = vrot.slane %v513, 2
    %v526 = vsel %vm406, %v523, %v525
    %v527 = vrot.slane %v514, 2
    %v528 = vsel %vm406, %v525, %v527
    %529 = vrot.lane.b32.xlu0 %v522, 125
    %v530 = vpop.permute.xlu0 %529
    %531 = vrot.lane.b32.xlu0 %v524, 125
    %v532 = vpop.permute.xlu0 %531
    %533 = vrot.lane.b32.xlu0 %v526, 125
    %v534 = vpop.permute.xlu0 %533
    %535 = vrot.lane.b32.xlu0 %v528, 125
    %v536 = vpop.permute.xlu0 %535
    %537 = vrot.lane.b32.xlu0 %v527, 125
    %v538 = vpop.permute.xlu0 %537
    %v544 = vadd.f32 %v503, %v530
    %v545 = vadd.f32 %v504, %v532
    %v546 = vadd.f32 %v505, %v534
    %v547 = vadd.f32 %v506, %v536
    %v548 = vadd.f32 %v507, %v538
    %s549 = sld [smem:[#allocation3 + $0xe]]
    %v550 = vstv %s549
    %v551 = vmul.f32 %v550, %v58
    %v552 = vmul.f32 %v550, %v59
    %v553 = vmul.f32 %v550, %v60
    %v554 = vmul.f32 %v550, %v61
    %v555 = vmul.f32 %v550, %v62
    %v561 = vrot.slane %v551, 2
    %v562 = vrot.slane %v552, 2
    %v563 = vsel %vm406, %v561, %v562
    %v564 = vrot.slane %v553, 2
    %v565 = vsel %vm406, %v562, %v564
    %v566 = vrot.slane %v554, 2
    %v567 = vsel %vm406, %v564, %v566
    %v568 = vrot.slane %v555, 2
    %v569 = vsel %vm406, %v566, %v568
    %570 = vrot.lane.b32.xlu0 %v563, 124
    %v571 = vpop.permute.xlu0 %570
    %572 = vrot.lane.b32.xlu0 %v565, 124
    %v573 = vpop.permute.xlu0 %572
    %574 = vrot.lane.b32.xlu0 %v567, 124
    %v575 = vpop.permute.xlu0 %574
    %576 = vrot.lane.b32.xlu0 %v569, 124
    %v577 = vpop.permute.xlu0 %576
    %578 = vrot.lane.b32.xlu0 %v568, 124
    %v579 = vpop.permute.xlu0 %578
    %v585 = vadd.f32 %v544, %v571
    %v586 = vadd.f32 %v545, %v573
    %v587 = vadd.f32 %v546, %v575
    %v588 = vadd.f32 %v547, %v577
    %v589 = vadd.f32 %v548, %v579
    %s590 = sld [smem:[#allocation3 + $0xf]]
    %v591 = vstv %s590
    %v592 = vmul.f32 %v591, %v58
    %v593 = vmul.f32 %v591, %v59
    %v594 = vmul.f32 %v591, %v60
    %v595 = vmul.f32 %v591, %v61
    %v596 = vmul.f32 %v591, %v62
    %vm602 = vcmask 1044480
    %v603 = vrot.slane %v592, 3
    %v604 = vrot.slane %v593, 3
    %v605 = vsel %vm602, %v603, %v604
    %v606 = vrot.slane %v594, 3
    %v607 = vsel %vm602, %v604, %v606
    %v608 = vrot.slane %v595, 3
    %v609 = vsel %vm602, %v606, %v608
    %v610 = vrot.slane %v596, 3
    %v611 = vsel %vm602, %v608, %v610
    %v617 = vadd.f32 %v585, %v605
    %v618 = vadd.f32 %v586, %v607
    %v619 = vadd.f32 %v587, %v609
    %v620 = vadd.f32 %v588, %v611
    %v621 = vadd.f32 %v589, %v610
    %s622 = sld [smem:[#allocation3 + $0x10]]
    %v623 = vstv %s622
    %v624 = vmul.f32 %v623, %v58
    %v625 = vmul.f32 %v623, %v59
    %v626 = vmul.f32 %v623, %v60
    %v627 = vmul.f32 %v623, %v61
    %v628 = vmul.f32 %v623, %v62
    %v634 = vrot.slane %v624, 3
    %v635 = vrot.slane %v625, 3
    %v636 = vsel %vm602, %v634, %v635
    %v637 = vrot.slane %v626, 3
    %v638 = vsel %vm602, %v635, %v637
    %v639 = vrot.slane %v627, 3
    %v640 = vsel %vm602, %v637, %v639
    %v641 = vrot.slane %v628, 3
    %v642 = vsel %vm602, %v639, %v641
    %643 = vrot.lane.b32.xlu0 %v636, 127
    %v644 = vpop.permute.xlu0 %643
    %645 = vrot.lane.b32.xlu0 %v638, 127
    %v646 = vpop.permute.xlu0 %645
    %647 = vrot.lane.b32.xlu0 %v640, 127
    %v648 = vpop.permute.xlu0 %647
    %649 = vrot.lane.b32.xlu0 %v642, 127
    %v650 = vpop.permute.xlu0 %649
    %651 = vrot.lane.b32.xlu0 %v641, 127
    %v652 = vpop.permute.xlu0 %651
    %v658 = vadd.f32 %v617, %v644
    %v659 = vadd.f32 %v618, %v646
    %v660 = vadd.f32 %v619, %v648
    %v661 = vadd.f32 %v620, %v650
    %v662 = vadd.f32 %v621, %v652
    %s663 = sld [smem:[#allocation3 + $0x11]]
    %v664 = vstv %s663
    %v665 = vmul.f32 %v664, %v58
    %v666 = vmul.f32 %v664, %v59
    %v667 = vmul.f32 %v664, %v60
    %v668 = vmul.f32 %v664, %v61
    %v669 = vmul.f32 %v664, %v62
    %v675 = vrot.slane %v665, 3
    %v676 = vrot.slane %v666, 3
    %v677 = vsel %vm602, %v675, %v676
    %v678 = vrot.slane %v667, 3
    %v679 = vsel %vm602, %v676, %v678
    %v680 = vrot.slane %v668, 3
    %v681 = vsel %vm602, %v678, %v680
    %v682 = vrot.slane %v669, 3
    %v683 = vsel %vm602, %v680, %v682
    %684 = vrot.lane.b32.xlu0 %v677, 126
    %v685 = vpop.permute.xlu0 %684
    %686 = vrot.lane.b32.xlu0 %v679, 126
    %v687 = vpop.permute.xlu0 %686
    %688 = vrot.lane.b32.xlu0 %v681, 126
    %v689 = vpop.permute.xlu0 %688
    %690 = vrot.lane.b32.xlu0 %v683, 126
    %v691 = vpop.permute.xlu0 %690
    %692 = vrot.lane.b32.xlu0 %v682, 126
    %v693 = vpop.permute.xlu0 %692
    %v699 = vadd.f32 %v658, %v685
    %v700 = vadd.f32 %v659, %v687
    %v701 = vadd.f32 %v660, %v689
    %v702 = vadd.f32 %v661, %v691
    %v703 = vadd.f32 %v662, %v693
    %s704 = sld [smem:[#allocation3 + $0x12]]
    %v705 = vstv %s704
    %v706 = vmul.f32 %v705, %v58
    %v707 = vmul.f32 %v705, %v59
    %v708 = vmul.f32 %v705, %v60
    %v709 = vmul.f32 %v705, %v61
    %v710 = vmul.f32 %v705, %v62
    %v716 = vrot.slane %v706, 3
    %v717 = vrot.slane %v707, 3
    %v718 = vsel %vm602, %v716, %v717
    %v719 = vrot.slane %v708, 3
    %v720 = vsel %vm602, %v717, %v719
    %v721 = vrot.slane %v709, 3
    %v722 = vsel %vm602, %v719, %v721
    %v723 = vrot.slane %v710, 3
    %v724 = vsel %vm602, %v721, %v723
    %725 = vrot.lane.b32.xlu0 %v718, 125
    %v726 = vpop.permute.xlu0 %725
    %727 = vrot.lane.b32.xlu0 %v720, 125
    %v728 = vpop.permute.xlu0 %727
    %729 = vrot.lane.b32.xlu0 %v722, 125
    %v730 = vpop.permute.xlu0 %729
    %731 = vrot.lane.b32.xlu0 %v724, 125
    %v732 = vpop.permute.xlu0 %731
    %733 = vrot.lane.b32.xlu0 %v723, 125
    %v734 = vpop.permute.xlu0 %733
    %v740 = vadd.f32 %v699, %v726
    %v741 = vadd.f32 %v700, %v728
    %v742 = vadd.f32 %v701, %v730
    %v743 = vadd.f32 %v702, %v732
    %v744 = vadd.f32 %v703, %v734
    %s745 = sld [smem:[#allocation3 + $0x13]]
    %v746 = vstv %s745
    %v747 = vmul.f32 %v746, %v58
    %v748 = vmul.f32 %v746, %v59
    %v749 = vmul.f32 %v746, %v60
    %v750 = vmul.f32 %v746, %v61
    %v751 = vmul.f32 %v746, %v62
    %v757 = vrot.slane %v747, 3
    %v758 = vrot.slane %v748, 3
    %v759 = vsel %vm602, %v757, %v758
    %v760 = vrot.slane %v749, 3
    %v761 = vsel %vm602, %v758, %v760
    %v762 = vrot.slane %v750, 3
    %v763 = vsel %vm602, %v760, %v762
    %v764 = vrot.slane %v751, 3
    %v765 = vsel %vm602, %v762, %v764
    %766 = vrot.lane.b32.xlu0 %v759, 124
    %v767 = vpop.permute.xlu0 %766
    %768 = vrot.lane.b32.xlu0 %v761, 124
    %v769 = vpop.permute.xlu0 %768
    %770 = vrot.lane.b32.xlu0 %v763, 124
    %v771 = vpop.permute.xlu0 %770
    %772 = vrot.lane.b32.xlu0 %v765, 124
    %v773 = vpop.permute.xlu0 %772
    %774 = vrot.lane.b32.xlu0 %v764, 124
    %v775 = vpop.permute.xlu0 %774
    %v781 = vadd.f32 %v740, %v767
    %v782 = vadd.f32 %v741, %v769
    %v783 = vadd.f32 %v742, %v771
    %v784 = vadd.f32 %v743, %v773
    %v785 = vadd.f32 %v744, %v775
    %s786 = sld [smem:[#allocation3 + $0x14]]
    %v787 = vstv %s786
    %v788 = vmul.f32 %v787, %v58
    %v789 = vmul.f32 %v787, %v59
    %v790 = vmul.f32 %v787, %v60
    %v791 = vmul.f32 %v787, %v61
    %v792 = vmul.f32 %v787, %v62
    %vm798 = vcmask 1043456
    %v799 = vrot.slane %v788, 4
    %v800 = vrot.slane %v789, 4
    %v801 = vsel %vm798, %v799, %v800
    %v802 = vrot.slane %v790, 4
    %v803 = vsel %vm798, %v800, %v802
    %v804 = vrot.slane %v791, 4
    %v805 = vsel %vm798, %v802, %v804
    %v806 = vrot.slane %v792, 4
    %v807 = vsel %vm798, %v804, %v806
    %v813 = vadd.f32 %v781, %v801
    %v814 = vadd.f32 %v782, %v803
    %v815 = vadd.f32 %v783, %v805
    %v816 = vadd.f32 %v784, %v807
    %v817 = vadd.f32 %v785, %v806
    %s818 = sld [smem:[#allocation3 + $0x15]]
    %v819 = vstv %s818
    %v820 = vmul.f32 %v819, %v58
    %v821 = vmul.f32 %v819, %v59
    %v822 = vmul.f32 %v819, %v60
    %v823 = vmul.f32 %v819, %v61
    %v824 = vmul.f32 %v819, %v62
    %v830 = vrot.slane %v820, 4
    %v831 = vrot.slane %v821, 4
    %v832 = vsel %vm798, %v830, %v831
    %v833 = vrot.slane %v822, 4
    %v834 = vsel %vm798, %v831, %v833
    %v835 = vrot.slane %v823, 4
    %v836 = vsel %vm798, %v833, %v835
    %v837 = vrot.slane %v824, 4
    %v838 = vsel %vm798, %v835, %v837
    %839 = vrot.lane.b32.xlu0 %v832, 127
    %v840 = vpop.permute.xlu0 %839
    %841 = vrot.lane.b32.xlu0 %v834, 127
    %v842 = vpop.permute.xlu0 %841
    %843 = vrot.lane.b32.xlu0 %v836, 127
    %v844 = vpop.permute.xlu0 %843
    %845 = vrot.lane.b32.xlu0 %v838, 127
    %v846 = vpop.permute.xlu0 %845
    %847 = vrot.lane.b32.xlu0 %v837, 127
    %v848 = vpop.permute.xlu0 %847
    %v854 = vadd.f32 %v813, %v840
    %v855 = vadd.f32 %v814, %v842
    %v856 = vadd.f32 %v815, %v844
    %v857 = vadd.f32 %v816, %v846
    %v858 = vadd.f32 %v817, %v848
    %s859 = sld [smem:[#allocation3 + $0x16]]
    %v860 = vstv %s859
    %v861 = vmul.f32 %v860, %v58
    %v862 = vmul.f32 %v860, %v59
    %v863 = vmul.f32 %v860, %v60
    %v864 = vmul.f32 %v860, %v61
    %v865 = vmul.f32 %v860, %v62
    %v871 = vrot.slane %v861, 4
    %v872 = vrot.slane %v862, 4
    %v873 = vsel %vm798, %v871, %v872
    %v874 = vrot.slane %v863, 4
    %v875 = vsel %vm798, %v872, %v874
    %v876 = vrot.slane %v864, 4
    %v877 = vsel %vm798, %v874, %v876
    %v878 = vrot.slane %v865, 4
    %v879 = vsel %vm798, %v876, %v878
    %880 = vrot.lane.b32.xlu0 %v873, 126
    %v881 = vpop.permute.xlu0 %880
    %882 = vrot.lane.b32.xlu0 %v875, 126
    %v883 = vpop.permute.xlu0 %882
    %884 = vrot.lane.b32.xlu0 %v877, 126
    %v885 = vpop.permute.xlu0 %884
    %886 = vrot.lane.b32.xlu0 %v879, 126
    %v887 = vpop.permute.xlu0 %886
    %888 = vrot.lane.b32.xlu0 %v878, 126
    %v889 = vpop.permute.xlu0 %888
    %v895 = vadd.f32 %v854, %v881
    %v896 = vadd.f32 %v855, %v883
    %v897 = vadd.f32 %v856, %v885
    %v898 = vadd.f32 %v857, %v887
    %v899 = vadd.f32 %v858, %v889
    %s900 = sld [smem:[#allocation3 + $0x17]]
    %v901 = vstv %s900
    %v902 = vmul.f32 %v901, %v58
    %v903 = vmul.f32 %v901, %v59
    %v904 = vmul.f32 %v901, %v60
    %v905 = vmul.f32 %v901, %v61
    %v906 = vmul.f32 %v901, %v62
    %v912 = vrot.slane %v902, 4
    %v913 = vrot.slane %v903, 4
    %v914 = vsel %vm798, %v912, %v913
    %v915 = vrot.slane %v904, 4
    %v916 = vsel %vm798, %v913, %v915
    %v917 = vrot.slane %v905, 4
    %v918 = vsel %vm798, %v915, %v917
    %v919 = vrot.slane %v906, 4
    %v920 = vsel %vm798, %v917, %v919
    %921 = vrot.lane.b32.xlu0 %v914, 125
    %v922 = vpop.permute.xlu0 %921
    %923 = vrot.lane.b32.xlu0 %v916, 125
    %v924 = vpop.permute.xlu0 %923
    %925 = vrot.lane.b32.xlu0 %v918, 125
    %v926 = vpop.permute.xlu0 %925
    %927 = vrot.lane.b32.xlu0 %v920, 125
    %v928 = vpop.permute.xlu0 %927
    %929 = vrot.lane.b32.xlu0 %v919, 125
    %v930 = vpop.permute.xlu0 %929
    %v936 = vadd.f32 %v895, %v922
    %v937 = vadd.f32 %v896, %v924
    %v938 = vadd.f32 %v897, %v926
    %v939 = vadd.f32 %v898, %v928
    %v940 = vadd.f32 %v899, %v930
    %s941 = sld [smem:[#allocation3 + $0x18]]
    %v942 = vstv %s941
    %v943 = vmul.f32 %v942, %v58
    %v944 = vmul.f32 %v942, %v59
    %v945 = vmul.f32 %v942, %v60
    %v946 = vmul.f32 %v942, %v61
    %v947 = vmul.f32 %v942, %v62
    %v953 = vrot.slane %v943, 4
    %v954 = vrot.slane %v944, 4
    %v955 = vsel %vm798, %v953, %v954
    %v956 = vrot.slane %v945, 4
    %v957 = vsel %vm798, %v954, %v956
    %v958 = vrot.slane %v946, 4
    %v959 = vsel %vm798, %v956, %v958
    %v960 = vrot.slane %v947, 4
    %v961 = vsel %vm798, %v958, %v960
    %962 = vrot.lane.b32.xlu0 %v955, 124
    %v963 = vpop.permute.xlu0 %962
    %964 = vrot.lane.b32.xlu0 %v957, 124
    %v965 = vpop.permute.xlu0 %964
    %966 = vrot.lane.b32.xlu0 %v959, 124
    %v967 = vpop.permute.xlu0 %966
    %968 = vrot.lane.b32.xlu0 %v961, 124
    %v969 = vpop.permute.xlu0 %968
    %970 = vrot.lane.b32.xlu0 %v960, 124
    %v971 = vpop.permute.xlu0 %970
    %v977 = vadd.f32 %v936, %v963
    %v978 = vadd.f32 %v937, %v965
    %v979 = vadd.f32 %v938, %v967
    %v980 = vadd.f32 %v939, %v969
    %v981 = vadd.f32 %v940, %v971
    %v982 = vld [vmem:[%s1] sm:$0xff]
    %v983 = vld [vmem:[%s1 + $0x8] sm:$0xff]
    %v984 = vld [vmem:[%s1 + $0x10] sm:$0xff]
    %v985 = vld [vmem:[%s1 + $0x18] sm:$0xff]
    %v986 = vld [vmem:[%s1 + $0x20] sm:$0xf]
    %s987 = scalar_lea.vmem %s1, 40
    %v988 = vld [vmem:[%s987] sm:$0xff]
    %v989 = vld [vmem:[%s987 + $0x8] sm:$0xff]
    %v990 = vld [vmem:[%s987 + $0x10] sm:$0xff]
    %v991 = vld [vmem:[%s987 + $0x18] sm:$0xff]
    %v992 = vld [vmem:[%s987 + $0x20] sm:$0xf]
    %v993 = vmul.f32 %v977, %v982
    %v994 = vmul.f32 %v978, %v983
    %v995 = vmul.f32 %v979, %v984
    %v996 = vmul.f32 %v980, %v985
    %v997 = vmul.f32 %v981, %v986
    %v998 = vadd.f32 %v993, %v988
    %v999 = vadd.f32 %v994, %v989
    %v1000 = vadd.f32 %v995, %v990
    %v1001 = vadd.f32 %v996, %v991
    %v1002 = vadd.f32 %v997, %v992
    %v1003 = vmax.f32 %v998, 0.0
    %v1004 = vmax.f32 %v999, 0.0
    %v1005 = vmax.f32 %v1000, 0.0
    %v1006 = vmax.f32 %v1001, 0.0
    %v1007 = vmax.f32 %v1002, 0.0
    %vm1008 = vcmask 326656
    %1009 = vst.msk [vmem:[%s3] sm:$0xff] %vm1008, %v1003
    %1010 = vst.msk [vmem:[%s3 + $0x8] sm:$0xff] %vm1008, %v1004
    %1011 = vst.msk [vmem:[%s3 + $0x10] sm:$0xff] %vm1008, %v1005
    %1012 = vst.msk [vmem:[%s3 + $0x18] sm:$0xff] %vm1008, %v1006
    %vm1013 = vcmask 322560
    %1014 = vst.msk [vmem:[%s3 + $0x20] sm:$0xf] %vm1013, %v1007
    // Predicated region
    $region18: #{_model_forward.1} parent=1 // pred_check
      _
    $region19: #{_model_forward.1} parent=1 // pred_check_branch
      %1016 = sbr.rel (0) target = $region21
    $region20: #{_model_forward.1} parent=1 // pred_region
      _
    $region21: #{_model_forward.1} parent=1 // pred_fallthru
      _
    // Predicated region
    $region22: #{_model_forward.1} parent=1 // pred_check
      _
    $region23: #{_model_forward.1} parent=1 // pred_check_branch
      %1018 = sbr.rel (0) target = $region25
    $region24: #{_model_forward.1} parent=1 // pred_region
      _
    $region25: #{_model_forward.1} parent=1 // pred_fallthru
      _
    %1019 = vsyncpa [#allocation4], 1

</llo_original>
